<compile_context>
chip_gen: v5e
topology: v5e:2x2
jax: 0.10.0
libtpu: 0.0.40
codegen_flags: <defaults>
</compile_context>

<pallas_src>
import functools

import jax
import jax.numpy as jnp
from jax.experimental import pallas as pl
from jax.experimental.pallas import tpu as pltpu


def _smoothing_ce_kernel(logits_ref, labels_ref, loss_ref, *, on_w, off_w, c):
    """One row tile: per-row label-smoothing cross-entropy losses (f32)."""
    logits = logits_ref[...].astype(jnp.float32)          # (TN, C)
    labels = labels_ref[...]                               # (TN, 1) int32

    # Numerically stable log-sum-exp along the class (lane) axis.
    m = jnp.max(logits, axis=1, keepdims=True)              # (TN, 1)
    shifted = logits - m                                     # (TN, C)
    lse = jnp.log(jnp.sum(jnp.exp(shifted), axis=1, keepdims=True))   # (TN, 1)

    # shifted value at the label position (compare-based one-hot, no scatter)
    class_ids = jax.lax.broadcasted_iota(jnp.int32, shifted.shape, 1)
    onehot = class_ids == labels                              # (TN, C) bool
    shifted_lab = jnp.sum(jnp.where(onehot, shifted, 0.0), axis=1, keepdims=True)
    s_sum = jnp.sum(shifted, axis=1, keepdims=True)

    # loss = (1-eps)*(lse - shifted_lab)
    #      + eps/(C-1)*((C-1)*lse - (sum(shifted) - shifted_lab))
    losses = (jnp.float32(on_w) * (lse - shifted_lab)
              + jnp.float32(off_w) * ((c - 1) * lse - (s_sum - shifted_lab)))
    loss_ref[...] = losses                                    # (TN, 1)


def _choose_block_rows(n, c, itemsize):
    """Largest row tile <= ~4 MiB per buffer (fits double-buffered on all gens)."""
    target_bytes = 4 * 1024 * 1024
    tn = max(1, target_bytes // max(1, c * itemsize))
    tn = min(tn, 1024, n)
    mult = 16 if itemsize == 2 else 8
    if tn >= mult:
        tn = (tn // mult) * mult
    else:
        tn = n  # tiny N: single block equal to the full dim (always legal)
    return int(tn)


def smoothing_label_cross_entropy(logits, labels, epsilon=0.1, reduction="mean",
                                  block_rows=None):
    """Pallas equivalent of SmoothingLabelCrossEntropyLoss.forward.

    logits: (N, C) float array; labels: (N,) int class indices.
    """
    n, c = logits.shape
    if c < 2:
        raise ValueError("SmoothingLabelCrossEntropyLoss requires C >= 2 "
                         "(epsilon/(C-1) smoothing).")
    if reduction not in ("none", "mean", "sum"):
        raise AssertionError("reduction has to be none, mean or sum")

    itemsize = jnp.dtype(logits.dtype).itemsize
    if block_rows is None:
        tn = _choose_block_rows(n, c, itemsize)
    else:
        tn = min(int(block_rows), n)
        mult = 16 if itemsize == 2 else 8
        if tn != n and tn % mult:
            tn = max(mult, (tn // mult) * mult)

    labels2d = labels.astype(jnp.int32).reshape(n, 1)
    num_tiles = pl.cdiv(n, tn)

    kernel = functools.partial(
        _smoothing_ce_kernel,
        on_w=float(1.0 - epsilon),
        off_w=float(epsilon) / float(c - 1),
        c=c)

    cost = pl.CostEstimate(
        flops=8 * n * c,
        transcendentals=n * c,
        bytes_accessed=n * c * itemsize + 2 * n * 4)

    per_row = pl.pallas_call(
        kernel,
        out_shape=jax.ShapeDtypeStruct((n, 1), jnp.float32),
        grid=(num_tiles,),
        in_specs=[pl.BlockSpec((tn, c), lambda i: (i, 0)),
                  pl.BlockSpec((tn, 1), lambda i: (i, 0))],
        out_specs=pl.BlockSpec((tn, 1), lambda i: (i, 0)),
        compiler_params=pltpu.CompilerParams(
            dimension_semantics=("parallel",),
            vmem_limit_bytes=32 * 1024 * 1024),
        cost_estimate=cost,
    )(logits, labels2d)

    losses = per_row[:, 0]                       # (N,)
    if reduction == "none":
        return losses
    if reduction == "sum":
        return jnp.sum(losses)
    return jnp.sum(losses) / jnp.float32(n)      # mean


def _reference(logits, labels, epsilon=0.1, reduction="mean"):
    n, c = logits.shape
    logp = jax.nn.log_softmax(logits.astype(jnp.float32), axis=1)
    smoothed = jnp.full((n, c), epsilon / (c - 1), dtype=jnp.float32)
    smoothed = smoothed.at[jnp.arange(n), labels].set(1.0 - epsilon)
    losses = -jnp.sum(logp * smoothed, axis=1)
    if reduction == "none":
        return losses
    if reduction == "sum":
        return jnp.sum(losses)
    return jnp.sum(losses) / n


if __name__ == "__main__":
    key = jax.random.PRNGKey(0)
    k_logits, k_labels = jax.random.split(key)

    N, C = 64, 40
    logits = jax.random.normal(k_logits, (N, C), dtype=jnp.float32)
    labels = jax.random.randint(k_labels, (N,), 0, C, dtype=jnp.int32)

    # default module config: epsilon=0.1, reduction='mean' (auto tile size)
    loss = jax.block_until_ready(
        smoothing_label_cross_entropy(logits, labels, epsilon=0.1,
                                      reduction="mean"))
    ref = _reference(logits, labels, 0.1, "mean")
    assert jnp.allclose(loss, ref, rtol=1e-5, atol=1e-5), (loss, ref)

    # other reductions, with an explicit small row tile to exercise the grid
    for red in ("sum", "none"):
        out = jax.block_until_ready(
            smoothing_label_cross_entropy(logits, labels, 0.1, red,
                                          block_rows=16))
        ref_r = _reference(logits, labels, 0.1, red)
        assert jnp.allclose(out, ref_r, rtol=1e-5, atol=1e-5), (red, out, ref_r)

    # bf16 logits from HBM, upcast per-tile inside the kernel
    logits_bf16 = logits.astype(jnp.bfloat16)
    out_bf16 = jax.block_until_ready(
        smoothing_label_cross_entropy(logits_bf16, labels, 0.1, "mean",
                                      block_rows=16))
    ref_bf16 = _reference(logits_bf16.astype(jnp.float32), labels, 0.1, "mean")
    assert jnp.allclose(out_bf16, ref_bf16, rtol=1e-4, atol=1e-4), (out_bf16,
                                                                    ref_bf16)

    print("KERNEL_OK")
</pallas_src>

<mosaic_0001>
module attributes {stable_mosaic.version = 11 : i64} {
  func.func @_smoothing_ce_kernel(%arg0: i32, %arg1: memref<64x40xf32, #tpu.memory_space<vmem>>, %arg2: memref<64x1xi32, #tpu.memory_space<vmem>>, %arg3: memref<64x1xf32, #tpu.memory_space<vmem>>) attributes {dimension_semantics = [#tpu.dimension_semantics<parallel>], iteration_bounds = array<i64: 1>, scalar_prefetch = 0 : i64, scratch_operands = 0 : i64, tpu.core_type = #tpu.core_type<tc>, window_params = [{transform_indices = @transform_0, window_bounds = array<i64: 64, 40>}, {transform_indices = @transform_1, window_bounds = array<i64: 64, 1>}, {transform_indices = @transform_2, window_bounds = array<i64: 64, 1>}]} {
    %c0 = arith.constant 0 : index
    %c0_0 = arith.constant 0 : index
    %0 = vector.load %arg1[%c0, %c0_0] : memref<64x40xf32, #tpu.memory_space<vmem>>, vector<64x40xf32>
    %c0_1 = arith.constant 0 : index
    %c0_2 = arith.constant 0 : index
    %1 = vector.load %arg2[%c0_1, %c0_2] : memref<64x1xi32, #tpu.memory_space<vmem>>, vector<64x1xi32>
    %cst = arith.constant dense<0xFF800000> : vector<64xf32>
    %2 = vector.multi_reduction <maximumf>, %0, %cst [1] : vector<64x40xf32> to vector<64xf32>
    %3 = vector.shape_cast %2 : vector<64xf32> to vector<64x1xf32>
    %4 = vector.broadcast %3 : vector<64x1xf32> to vector<64x40xf32>
    %5 = arith.subf %0, %4 : vector<64x40xf32>
    %6 = math.exp %5 : vector<64x40xf32>
    %cst_3 = arith.constant dense<0.000000e+00> : vector<64xf32>
    %7 = vector.multi_reduction <add>, %6, %cst_3 [1] : vector<64x40xf32> to vector<64xf32>
    %8 = vector.shape_cast %7 : vector<64xf32> to vector<64x1xf32>
    %9 = math.log %8 : vector<64x1xf32>
    %10 = tpu.iota {dimensions = array<i32: 1>} : vector<64x40xi32>
    %11 = vector.broadcast %1 : vector<64x1xi32> to vector<64x40xi32>
    %12 = arith.cmpi eq, %10, %11 : vector<64x40xi32>
    %cst_4 = arith.constant 0.000000e+00 : f32
    %13 = vector.broadcast %cst_4 : f32 to vector<64x40xf32>
    %14 = arith.select %12, %5, %13 : vector<64x40xi1>, vector<64x40xf32>
    %cst_5 = arith.constant dense<0.000000e+00> : vector<64xf32>
    %15 = vector.multi_reduction <add>, %14, %cst_5 [1] : vector<64x40xf32> to vector<64xf32>
    %16 = vector.shape_cast %15 : vector<64xf32> to vector<64x1xf32>
    %cst_6 = arith.constant dense<0.000000e+00> : vector<64xf32>
    %17 = vector.multi_reduction <add>, %5, %cst_6 [1] : vector<64x40xf32> to vector<64xf32>
    %18 = vector.shape_cast %17 : vector<64xf32> to vector<64x1xf32>
    %19 = arith.subf %9, %16 : vector<64x1xf32>
    %cst_7 = arith.constant 0.899999976 : f32
    %20 = vector.broadcast %cst_7 : f32 to vector<64x1xf32>
    %21 = arith.mulf %20, %19 : vector<64x1xf32>
    %cst_8 = arith.constant 3.900000e+01 : f32
    %22 = vector.broadcast %cst_8 : f32 to vector<64x1xf32>
    %23 = arith.mulf %22, %9 : vector<64x1xf32>
    %24 = arith.subf %18, %16 : vector<64x1xf32>
    %25 = arith.subf %23, %24 : vector<64x1xf32>
    %cst_9 = arith.constant 0.00256410264 : f32
    %26 = vector.broadcast %cst_9 : f32 to vector<64x1xf32>
    %27 = arith.mulf %26, %25 : vector<64x1xf32>
    %28 = arith.addf %21, %27 : vector<64x1xf32>
    %c0_10 = arith.constant 0 : index
    %c0_11 = arith.constant 0 : index
    %29 = vector.load %arg3[%c0_10, %c0_11] : memref<64x1xf32, #tpu.memory_space<vmem>>, vector<64x1xf32>
    tpu.vector_store %arg3[%c0_10, %c0_11], %28 {strides = array<i32>} : memref<64x1xf32, #tpu.memory_space<vmem>>, vector<64x1xf32>,
    return
  }
  func.func @transform_0(%arg0: i32) -> (i32, i32) {
    %c0_i32 = arith.constant 0 : i32
    %c0_i32_0 = arith.constant 0 : i32
    return %arg0, %c0_i32 : i32, i32
  }
  func.func @transform_1(%arg0: i32) -> (i32, i32) {
    %c0_i32 = arith.constant 0 : i32
    %c0_i32_0 = arith.constant 0 : i32
    return %arg0, %c0_i32 : i32, i32
  }
  func.func @transform_2(%arg0: i32) -> (i32, i32) {
    %c0_i32 = arith.constant 0 : i32
    %c0_i32_0 = arith.constant 0 : i32
    return %arg0, %c0_i32 : i32, i32
  }
}

</mosaic_0001>

<llo_original>
// kernel: tpu_custom_call.1
$region0: #{tpu_custom_call.1}
  #allocation0 [shape = 'u32[]', space=smem, size = 0x4, offset = 0x4, fixed_abs, tag = 'smem constant byte address 0x4 - core index']
  #allocation1 [shape = 'u32[72,128]{1,0:T(1,128)}', space=vmem, size = 0x9000, scoped, tag = 'internal scratch']
  %s0 = inlined_call_operand.vmem [shape: f32[64,40], index: 0, kind: input, shape index: {}]
  %s1 = inlined_call_operand.vmem [shape: s32[64,1], index: 1, kind: input, shape index: {}]
  %s2 = inlined_call_operand.vmem [shape: f32[64,1], index: 2, kind: output, shape index: {}]
  %s3 = sld [smem:[#allocation0]]
  $region18: #{tpu_custom_call.1} parent=0
    _
  %s5 = ssub.s32 1, %s3
  %s6 = scalar_select 0, %s5, %s3
  // Predicated region
  $region2: #{tpu_custom_call.1} parent=0 // pred_check
    _
  $region3: #{tpu_custom_call.1} parent=0 // pred_check_branch
    %8 = sbr.rel (0) target = $region5
  $region4: #{tpu_custom_call.1} parent=0 // pred_region
    _
  $region5: #{tpu_custom_call.1} parent=0 // pred_fallthru
    _
  // Predicated region
  $region6: #{tpu_custom_call.1} parent=0 // pred_check
    _
  $region7: #{tpu_custom_call.1} parent=0 // pred_check_branch
    %10 = sbr.rel (0) target = $region9
  $region8: #{tpu_custom_call.1} parent=0 // pred_region
    _
  $region9: #{tpu_custom_call.1} parent=0 // pred_fallthru
    _
  %v11 = vld [vmem:[%s0] sm:$0xff]
  %v12 = vld [vmem:[%s0 + $0x8] sm:$0xff]
  %v13 = vld [vmem:[%s0 + $0x10] sm:$0xff]
  %v14 = vld [vmem:[%s0 + $0x18] sm:$0xff]
  %v15 = vld [vmem:[%s0 + $0x20] sm:$0xff]
  %v16 = vld [vmem:[%s0 + $0x28] sm:$0xff]
  %v17 = vld [vmem:[%s0 + $0x30] sm:$0xff]
  %v18 = vld [vmem:[%s0 + $0x38] sm:$0xff]
  %v19 = vld [vmem:[%s1] sm:$0xff]
  %v20 = vld [vmem:[%s1 + $0x8] sm:$0xff]
  %v21 = vld [vmem:[%s1 + $0x10] sm:$0xff]
  %v22 = vld [vmem:[%s1 + $0x18] sm:$0xff]
  %v23 = vld [vmem:[%s1 + $0x20] sm:$0xff]
  %v24 = vld [vmem:[%s1 + $0x28] sm:$0xff]
  %v25 = vld [vmem:[%s1 + $0x30] sm:$0xff]
  %v26 = vld [vmem:[%s1 + $0x38] sm:$0xff]
  %vm27 = vcmask 326656
  %v28 = vsel %vm27, %v11, -inf
  %29 = vmax.xlane.f32.xlu0 %v28
  %v30 = vpop.xlane.xlu0 %29
  %v31 = vsel %vm27, %v12, -inf
  %32 = vmax.xlane.f32.xlu0 %v31
  %v33 = vpop.xlane.xlu0 %32
  %v34 = vsel %vm27, %v13, -inf
  %35 = vmax.xlane.f32.xlu0 %v34
  %v36 = vpop.xlane.xlu0 %35
  %v37 = vsel %vm27, %v14, -inf
  %38 = vmax.xlane.f32.xlu0 %v37
  %v39 = vpop.xlane.xlu0 %38
  %v40 = vsel %vm27, %v15, -inf
  %41 = vmax.xlane.f32.xlu0 %v40
  %v42 = vpop.xlane.xlu0 %41
  %v43 = vsel %vm27, %v16, -inf
  %44 = vmax.xlane.f32.xlu0 %v43
  %v45 = vpop.xlane.xlu0 %44
  %v46 = vsel %vm27, %v17, -inf
  %47 = vmax.xlane.f32.xlu0 %v46
  %v48 = vpop.xlane.xlu0 %47
  %v49 = vsel %vm27, %v18, -inf
  %50 = vmax.xlane.f32.xlu0 %v49
  %v51 = vpop.xlane.xlu0 %50
  %v52 = vsub.f32 %v11, %v30
  %v53 = vsub.f32 %v12, %v33
  %v54 = vsub.f32 %v13, %v36
  %v55 = vsub.f32 %v14, %v39
  %v56 = vsub.f32 %v15, %v42
  %v57 = vsub.f32 %v16, %v45
  %v58 = vsub.f32 %v17, %v48
  %v59 = vsub.f32 %v18, %v51
  %v60 = vmul.f32 %v52, 1.442695
  %v61 = vpow.pop %v60
  %v62 = vmul.f32 %v53, 1.442695
  %v63 = vpow.pop %v62
  %v64 = vmul.f32 %v54, 1.442695
  %v65 = vpow.pop %v64
  %v66 = vmul.f32 %v55, 1.442695
  %v67 = vpow.pop %v66
  %v68 = vmul.f32 %v56, 1.442695
  %v69 = vpow.pop %v68
  %v70 = vmul.f32 %v57, 1.442695
  %v71 = vpow.pop %v70
  %v72 = vmul.f32 %v58, 1.442695
  %v73 = vpow.pop %v72
  %v74 = vmul.f32 %v59, 1.442695
  %v75 = vpow.pop %v74
  %v76 = vsel %vm27, %v61, 0.0
  %77 = vadd.xlane.f32.xlu0 %v76
  %v78 = vpop.xlane.xlu0 %77
  %v79 = vsel %vm27, %v63, 0.0
  %80 = vadd.xlane.f32.xlu0 %v79
  %v81 = vpop.xlane.xlu0 %80
  %v82 = vsel %vm27, %v65, 0.0
  %83 = vadd.xlane.f32.xlu0 %v82
  %v84 = vpop.xlane.xlu0 %83
  %v85 = vsel %vm27, %v67, 0.0
  %86 = vadd.xlane.f32.xlu0 %v85
  %v87 = vpop.xlane.xlu0 %86
  %v88 = vsel %vm27, %v69, 0.0
  %89 = vadd.xlane.f32.xlu0 %v88
  %v90 = vpop.xlane.xlu0 %89
  %v91 = vsel %vm27, %v71, 0.0
  %92 = vadd.xlane.f32.xlu0 %v91
  %v93 = vpop.xlane.xlu0 %92
  %v94 = vsel %vm27, %v73, 0.0
  %95 = vadd.xlane.f32.xlu0 %v94
  %v96 = vpop.xlane.xlu0 %95
  %v97 = vsel %vm27, %v75, 0.0
  %98 = vadd.xlane.f32.xlu0 %v97
  %v99 = vpop.xlane.xlu0 %98
  %v100 = vlog2.pop %v78
  %v101 = vmul.f32 %v100, 0.6931472
  %v102 = vlog2.pop %v81
  %v103 = vmul.f32 %v102, 0.6931472
  %v104 = vlog2.pop %v84
  %v105 = vmul.f32 %v104, 0.6931472
  %v106 = vlog2.pop %v87
  %v107 = vmul.f32 %v106, 0.6931472
  %v108 = vlog2.pop %v90
  %v109 = vmul.f32 %v108, 0.6931472
  %v110 = vlog2.pop %v93
  %v111 = vmul.f32 %v110, 0.6931472
  %v112 = vlog2.pop %v96
  %v113 = vmul.f32 %v112, 0.6931472
  %v114 = vlog2.pop %v99
  %v115 = vmul.f32 %v114, 0.6931472
  %v116 = vlaneseq
  %v117 = vand.u32 %v116, 127
  %118 = vset.pattern.permute.xlu0 0
  %119 = vperm.xlu0 %118, %v19
  %v120 = vpop.permute.xlu0 %119
  %121 = vset.pattern.permute.xlu0 0
  %122 = vperm.xlu0 %121, %v20
  %v123 = vpop.permute.xlu0 %122
  %124 = vset.pattern.permute.xlu0 0
  %125 = vperm.xlu0 %124, %v21
  %v126 = vpop.permute.xlu0 %125
  %127 = vset.pattern.permute.xlu0 0
  %128 = vperm.xlu0 %127, %v22
  %v129 = vpop.permute.xlu0 %128
  %130 = vset.pattern.permute.xlu0 0
  %131 = vperm.xlu0 %130, %v23
  %v132 = vpop.permute.xlu0 %131
  %133 = vset.pattern.permute.xlu0 0
  %134 = vperm.xlu0 %133, %v24
  %v135 = vpop.permute.xlu0 %134
  %136 = vset.pattern.permute.xlu0 0
  %137 = vperm.xlu0 %136, %v25
  %v138 = vpop.permute.xlu0 %137
  %139 = vset.pattern.permute.xlu0 0
  %140 = vperm.xlu0 %139, %v26
  %v141 = vpop.permute.xlu0 %140
  %vm142 = vcmp.eq.s32.totalorder %v117, %v120
  %vm143 = vcmp.eq.s32.totalorder %v117, %v123
  %vm144 = vcmp.eq.s32.totalorder %v117, %v126
  %vm145 = vcmp.eq.s32.totalorder %v117, %v129
  %vm146 = vcmp.eq.s32.totalorder %v117, %v132
  %vm147 = vcmp.eq.s32.totalorder %v117, %v135
  %vm148 = vcmp.eq.s32.totalorder %v117, %v138
  %vm149 = vcmp.eq.s32.totalorder %v117, %v141
  %v150 = vsel %vm142, %v52, 0.0
  %v151 = vsel %vm143, %v53, 0.0
  %v152 = vsel %vm144, %v54, 0.0
  %v153 = vsel %vm145, %v55, 0.0
  %v154 = vsel %vm146, %v56, 0.0
  %v155 = vsel %vm147, %v57, 0.0
  %v156 = vsel %vm148, %v58, 0.0
  %v157 = vsel %vm149, %v59, 0.0
  %v158 = vsel %vm27, %v150, 0.0
  %159 = vadd.xlane.f32.xlu0 %v158
  %v160 = vpop.xlane.xlu0 %159
  %v161 = vsel %vm27, %v151, 0.0
  %162 = vadd.xlane.f32.xlu0 %v161
  %v163 = vpop.xlane.xlu0 %162
  %v164 = vsel %vm27, %v152, 0.0
  %165 = vadd.xlane.f32.xlu0 %v164
  %v166 = vpop.xlane.xlu0 %165
  %v167 = vsel %vm27, %v153, 0.0
  %168 = vadd.xlane.f32.xlu0 %v167
  %v169 = vpop.xlane.xlu0 %168
  %v170 = vsel %vm27, %v154, 0.0
  %171 = vadd.xlane.f32.xlu0 %v170
  %v172 = vpop.xlane.xlu0 %171
  %v173 = vsel %vm27, %v155, 0.0
  %174 = vadd.xlane.f32.xlu0 %v173
  %v175 = vpop.xlane.xlu0 %174
  %v176 = vsel %vm27, %v156, 0.0
  %177 = vadd.xlane.f32.xlu0 %v176
  %v178 = vpop.xlane.xlu0 %177
  %v179 = vsel %vm27, %v157, 0.0
  %180 = vadd.xlane.f32.xlu0 %v179
  %v181 = vpop.xlane.xlu0 %180
  %v182 = vsel %vm27, %v52, 0.0
  %183 = vadd.xlane.f32.xlu0 %v182
  %v184 = vpop.xlane.xlu0 %183
  %v185 = vsel %vm27, %v53, 0.0
  %186 = vadd.xlane.f32.xlu0 %v185
  %v187 = vpop.xlane.xlu0 %186
  %v188 = vsel %vm27, %v54, 0.0
  %189 = vadd.xlane.f32.xlu0 %v188
  %v190 = vpop.xlane.xlu0 %189
  %v191 = vsel %vm27, %v55, 0.0
  %192 = vadd.xlane.f32.xlu0 %v191
  %v193 = vpop.xlane.xlu0 %192
  %v194 = vsel %vm27, %v56, 0.0
  %195 = vadd.xlane.f32.xlu0 %v194
  %v196 = vpop.xlane.xlu0 %195
  %v197 = vsel %vm27, %v57, 0.0
  %198 = vadd.xlane.f32.xlu0 %v197
  %v199 = vpop.xlane.xlu0 %198
  %v200 = vsel %vm27, %v58, 0.0
  %201 = vadd.xlane.f32.xlu0 %v200
  %v202 = vpop.xlane.xlu0 %201
  %v203 = vsel %vm27, %v59, 0.0
  %204 = vadd.xlane.f32.xlu0 %v203
  %v205 = vpop.xlane.xlu0 %204
  %v206 = vsub.f32 %v101, %v160
  %v207 = vsub.f32 %v103, %v163
  %v208 = vsub.f32 %v105, %v166
  %v209 = vsub.f32 %v107, %v169
  %v210 = vsub.f32 %v109, %v172
  %v211 = vsub.f32 %v111, %v175
  %v212 = vsub.f32 %v113, %v178
  %v213 = vsub.f32 %v115, %v181
  %v214 = vmul.f32 %v206, 0.9
  %v215 = vmul.f32 %v207, 0.9
  %v216 = vmul.f32 %v208, 0.9
  %v217 = vmul.f32 %v209, 0.9
  %v218 = vmul.f32 %v210, 0.9
  %v219 = vmul.f32 %v211, 0.9
  %v220 = vmul.f32 %v212, 0.9
  %v221 = vmul.f32 %v213, 0.9
  %v222 = vmul.f32 %v101, 39.0
  %v223 = vmul.f32 %v103, 39.0
  %v224 = vmul.f32 %v105, 39.0
  %v225 = vmul.f32 %v107, 39.0
  %v226 = vmul.f32 %v109, 39.0
  %v227 = vmul.f32 %v111, 39.0
  %v228 = vmul.f32 %v113, 39.0
  %v229 = vmul.f32 %v115, 39.0
  %v230 = vsub.f32 %v184, %v160
  %v231 = vsub.f32 %v187, %v163
  %v232 = vsub.f32 %v190, %v166
  %v233 = vsub.f32 %v193, %v169
  %v234 = vsub.f32 %v196, %v172
  %v235 = vsub.f32 %v199, %v175
  %v236 = vsub.f32 %v202, %v178
  %v237 = vsub.f32 %v205, %v181
  %v238 = vsub.f32 %v222, %v230
  %v239 = vsub.f32 %v223, %v231
  %v240 = vsub.f32 %v224, %v232
  %v241 = vsub.f32 %v225, %v233
  %v242 = vsub.f32 %v226, %v234
  %v243 = vsub.f32 %v227, %v235
  %v244 = vsub.f32 %v228, %v236
  %v245 = vsub.f32 %v229, %v237
  %v246 = vmul.f32 %v238, 0.0025641026
  %v247 = vmul.f32 %v239, 0.0025641026
  %v248 = vmul.f32 %v240, 0.0025641026
  %v249 = vmul.f32 %v241, 0.0025641026
  %v250 = vmul.f32 %v242, 0.0025641026
  %v251 = vmul.f32 %v243, 0.0025641026
  %v252 = vmul.f32 %v244, 0.0025641026
  %v253 = vmul.f32 %v245, 0.0025641026
  %v254 = vadd.f32 %v214, %v246
  %v255 = vadd.f32 %v215, %v247
  %v256 = vadd.f32 %v216, %v248
  %v257 = vadd.f32 %v217, %v249
  %v258 = vadd.f32 %v218, %v250
  %v259 = vadd.f32 %v219, %v251
  %v260 = vadd.f32 %v220, %v252
  %v261 = vadd.f32 %v221, %v253
  %vm262 = vcmask 7168
  %263 = vst.msk [vmem:[%s2] sm:$0xff] %vm262, %v254
  %264 = vst.msk [vmem:[%s2 + $0x8] sm:$0xff] %vm262, %v255
  %265 = vst.msk [vmem:[%s2 + $0x10] sm:$0xff] %vm262, %v256
  %266 = vst.msk [vmem:[%s2 + $0x18] sm:$0xff] %vm262, %v257
  %267 = vst.msk [vmem:[%s2 + $0x20] sm:$0xff] %vm262, %v258
  %268 = vst.msk [vmem:[%s2 + $0x28] sm:$0xff] %vm262, %v259
  %269 = vst.msk [vmem:[%s2 + $0x30] sm:$0xff] %vm262, %v260
  %270 = vst.msk [vmem:[%s2 + $0x38] sm:$0xff] %vm262, %v261
  // Predicated region
  $region10: #{tpu_custom_call.1} parent=0 // pred_check
    _
  $region11: #{tpu_custom_call.1} parent=0 // pred_check_branch
    %272 = sbr.rel (0) target = $region13
  $region12: #{tpu_custom_call.1} parent=0 // pred_region
    _
  $region13: #{tpu_custom_call.1} parent=0 // pred_fallthru
    _
  // Predicated region
  $region14: #{tpu_custom_call.1} parent=0 // pred_check
    _
  $region15: #{tpu_custom_call.1} parent=0 // pred_check_branch
    %274 = sbr.rel (0) target = $region17
  $region16: #{tpu_custom_call.1} parent=0 // pred_region
    _
  $region17: #{tpu_custom_call.1} parent=0 // pred_fallthru
    _

</llo_original>
